<compile_context>
chip_gen: v7x
topology: tpu7x:2x2x1
jax: 0.10.0
libtpu: 0.0.40
codegen_flags: <defaults>
</compile_context>

<pallas_src>
import functools
import math

import jax
import jax.numpy as jnp
from jax.experimental import pallas as pl
from jax.experimental.pallas import tpu as pltpu


def _focal_loss_kernel(p_ref, l_ref, o_ref, *, alpha, gamma, tile_m, lw,
                       m_rows, need_mask, binary_labels):
    p = p_ref[...].astype(jnp.float32)
    lab = l_ref[...].astype(jnp.float32)

    eps = jnp.float32(1e-07)
    one = jnp.float32(1.0)
    q = one - p                      # reused for q**gamma and log(q + eps)

    if binary_labels:
        # Single-log form; exact only for hard {0,1} labels.
        pt = lab * p + (one - lab) * q
        w_neg = (jnp.float32(-alpha) * lab
                 + jnp.float32(alpha - 1.0) * (one - lab))
        loss = w_neg * (one - pt) ** gamma * jnp.log(pt + eps)
    else:
        # Soft-label-safe two-term form; leading negation folded into the
        # constants so no per-element final negate is needed.
        loss = (jnp.float32(-alpha) * q ** gamma * lab * jnp.log(p + eps)
                + jnp.float32(alpha - 1.0) * p ** gamma * (one - lab)
                * jnp.log(q + eps))

    def _store_unmasked():
        o_ref[...] = jnp.sum(loss, axis=0, keepdims=True)[None]

    if need_mask:
        # Only the last grid step can read Pallas's out-of-bounds block
        # padding rows, so the mask work is gated to that step only.
        i = pl.program_id(0)
        last = pl.num_programs(0) - 1

        @pl.when(i == last)
        def _():
            row = (jax.lax.broadcasted_iota(jnp.int32, (tile_m, lw), 0)
                   + i * tile_m)
            # Keep this a select (NOT a multiply): padding rows may hold
            # NaN/Inf garbage and NaN*0 would poison the partial sum.
            masked = jnp.where(row < m_rows, loss, jnp.float32(0.0))
            o_ref[...] = jnp.sum(masked, axis=0, keepdims=True)[None]

        @pl.when(i != last)
        def _():
            _store_unmasked()
    else:
        _store_unmasked()


_TARGET_BLOCK_ELEMS = 1024 * 1024     # ~4 MiB of f32 per input block
_MIN_SPLIT_BYTES = 512 * 1024         # split into >=2 grid steps above this
_VMEM_LIMIT_BYTES = 32 * 1024 * 1024  # explicit; safe on v5e/v6e/v7x


def _focal_tail_sum(p, lab, alpha, gamma):
    """Plain-JAX focal-loss sum for a tiny (< lane-width) ragged tail."""
    p = p.astype(jnp.float32)
    lab = lab.astype(jnp.float32)
    loss = -(alpha * (1.0 - p) ** gamma * lab * jnp.log(p + 1e-07)
             + (1.0 - alpha) * p ** gamma * (1.0 - lab)
             * jnp.log(1.0 - p + 1e-07))
    return jnp.sum(loss)


def focal_loss(preds, labels, alpha=0.75, gamma=2, size_average=True,
               binary_labels=False):
    """Pallas implementation of FocalLoss.forward. Returns a scalar float32."""
    alpha = float(alpha)
    if float(gamma) == int(gamma):
        gamma = int(gamma)   # static int -> integer_pow (VPU), not exp/log (EUP)

    total = math.prod(preds.shape)
    p_flat = preds.reshape(-1)
    l_flat = labels.reshape(-1)

    # Lane width (multiple of 128) that divides the element count if possible.
    lw = None
    for cand in (1024, 512, 256, 128):
        if total >= cand and total % cand == 0:
            lw = cand
            break

    tail_sum = jnp.float32(0.0)
    if lw is None:
        # Ragged count: main slab through Pallas, tiny tail in plain JAX.
        # (No full-array jnp.pad -> no extra HBM read+write of the inputs.)
        lw = 128
        rows_full = total // lw
        slab_elems = rows_full * lw
        tail_sum = _focal_tail_sum(p_flat[slab_elems:], l_flat[slab_elems:],
                                   alpha, gamma)
        if rows_full == 0:
            loss_sum = tail_sum
            return loss_sum / jnp.float32(total) if size_average else loss_sum
        p_flat = p_flat[:slab_elems]
        l_flat = l_flat[:slab_elems]

    m_rows = p_flat.shape[0] // lw
    p2 = p_flat.reshape(m_rows, lw)
    l2 = l_flat.reshape(m_rows, lw)

    # Row-block size: ~4 MiB of f32 per input block, multiple of 8 sublanes.
    tm_cap = max(8, (_TARGET_BLOCK_ELEMS // lw) // 8 * 8)
    if m_rows > tm_cap:
        tm = tm_cap
    else:
        tm = m_rows              # full-dim block (allowed even if not % 8)
        # Megacore: guarantee >= 2 grid steps for non-trivial inputs so the
        # "parallel" axis can be sharded across both v7x TensorCores.
        if m_rows * lw * 4 >= _MIN_SPLIT_BYTES and m_rows >= 16:
            half = (m_rows // 2) // 8 * 8
            if half >= 8:
                tm = half
    n_outer = -(-m_rows // tm)
    need_mask = (n_outer * tm) != m_rows

    kernel = functools.partial(
        _focal_loss_kernel, alpha=alpha, gamma=gamma, tile_m=tm, lw=lw,
        m_rows=m_rows, need_mask=need_mask, binary_labels=binary_labels)

    elems = m_rows * lw
    cost = pl.CostEstimate(
        flops=(10 if binary_labels else 16) * elems,
        transcendentals=(1 if binary_labels else 2) * elems,
        bytes_accessed=elems * (preds.dtype.itemsize + labels.dtype.itemsize)
        + 4 * lw * n_outer,
    )

    partials = pl.pallas_call(
        kernel,
        out_shape=jax.ShapeDtypeStruct((n_outer, 1, lw), jnp.float32),
        grid=(n_outer,),
        in_specs=[
            pl.BlockSpec((tm, lw), lambda i: (i, 0)),
            pl.BlockSpec((tm, lw), lambda i: (i, 0)),
        ],
        out_specs=pl.BlockSpec((1, 1, lw), lambda i: (i, 0, 0)),
        compiler_params=pltpu.CompilerParams(
            dimension_semantics=("parallel",),
            vmem_limit_bytes=_VMEM_LIMIT_BYTES),
        cost_estimate=cost,
    )(p2, l2)

    loss_sum = jnp.sum(partials) + tail_sum
    if size_average:
        return loss_sum / jnp.float32(total)
    return loss_sum


def _focal_loss_ref(preds, labels, alpha=0.75, gamma=2, size_average=True):
    B = preds.shape[0]
    p = preds.reshape(B, -1).astype(jnp.float32)
    l = labels.reshape(B, -1).astype(jnp.float32)
    loss = -(alpha * (1 - p) ** gamma * l * jnp.log(p + 1e-07)
             + (1 - alpha) * p ** gamma * (1 - l) * jnp.log(1 - p + 1e-07))
    return jnp.mean(loss) if size_average else jnp.sum(loss)


if __name__ == "__main__":
    key = jax.random.PRNGKey(0)
    kp, kl = jax.random.split(key)

    # Small NCHW inputs consistent with a segmentation head output.
    B, C, H, W = 2, 4, 16, 16
    preds = jax.nn.sigmoid(jax.random.normal(kp, (B, C, H, W), jnp.float32))
    labels = (jax.random.uniform(kl, (B, C, H, W)) > 0.5).astype(jnp.float32)

    loss_fn = jax.jit(functools.partial(
        focal_loss, alpha=0.75, gamma=2, size_average=True))
    out = jax.block_until_ready(loss_fn(preds, labels))
    ref = _focal_loss_ref(preds, labels, alpha=0.75, gamma=2,
                          size_average=True)
    assert jnp.allclose(out, ref, rtol=1e-5, atol=1e-6), (out, ref)

    # Single-log fast path (exact for hard {0,1} labels).
    out_bin = jax.block_until_ready(jax.jit(functools.partial(
        focal_loss, alpha=0.75, gamma=2, size_average=True,
        binary_labels=True))(preds, labels))
    assert jnp.allclose(out_bin, ref, rtol=1e-5, atol=1e-6), (out_bin, ref)

    # Ragged element count (not a multiple of 128): exercises the
    # slab-plus-plain-JAX-tail path (no full-array pad copy).
    pr = jax.nn.sigmoid(jax.random.normal(kp, (2, 3, 7, 11), jnp.float32))
    lr = (jax.random.uniform(kl, (2, 3, 7, 11)) > 0.5).astype(jnp.float32)
    out_r = jax.block_until_ready(jax.jit(functools.partial(
        focal_loss, alpha=0.75, gamma=2, size_average=False))(pr, lr))
    ref_r = _focal_loss_ref(pr, lr, alpha=0.75, gamma=2, size_average=False)
    assert jnp.allclose(out_r, ref_r, rtol=1e-5, atol=1e-4), (out_r, ref_r)

    print("KERNEL_OK")
</pallas_src>

<mosaic_0001>
module attributes {stable_mosaic.version = 11 : i64} {
  func.func @_focal_loss_kernel(%arg0: i32, %arg1: memref<2x1024xf32, #tpu.memory_space<vmem>>, %arg2: memref<2x1024xf32, #tpu.memory_space<vmem>>, %arg3: memref<1x1x1024xf32, #tpu.memory_space<vmem>>) attributes {dimension_semantics = [#tpu.dimension_semantics<parallel>], iteration_bounds = array<i64: 1>, scalar_prefetch = 0 : i64, scratch_operands = 0 : i64, tpu.core_type = #tpu.core_type<tc>, window_params = [{transform_indices = @transform_0, window_bounds = array<i64: 2, 1024>}, {transform_indices = @transform_1, window_bounds = array<i64: 2, 1024>}, {transform_indices = @transform_2, window_bounds = array<i64: 1, 1, 1024>}]} {
    %c0 = arith.constant 0 : index
    %c0_0 = arith.constant 0 : index
    %0 = vector.load %arg1[%c0, %c0_0] : memref<2x1024xf32, #tpu.memory_space<vmem>>, vector<2x1024xf32>
    %c0_1 = arith.constant 0 : index
    %c0_2 = arith.constant 0 : index
    %1 = vector.load %arg2[%c0_1, %c0_2] : memref<2x1024xf32, #tpu.memory_space<vmem>>, vector<2x1024xf32>
    %cst = arith.constant 1.000000e+00 : f32
    %2 = vector.broadcast %cst : f32 to vector<2x1024xf32>
    %3 = arith.subf %2, %0 : vector<2x1024xf32>
    %4 = arith.mulf %3, %3 : vector<2x1024xf32>
    %cst_3 = arith.constant -7.500000e-01 : f32
    %5 = vector.broadcast %cst_3 : f32 to vector<2x1024xf32>
    %6 = arith.mulf %5, %4 : vector<2x1024xf32>
    %7 = arith.mulf %6, %1 : vector<2x1024xf32>
    %cst_4 = arith.constant 1.000000e-07 : f32
    %8 = vector.broadcast %cst_4 : f32 to vector<2x1024xf32>
    %9 = arith.addf %0, %8 : vector<2x1024xf32>
    %10 = math.log %9 : vector<2x1024xf32>
    %11 = arith.mulf %7, %10 : vector<2x1024xf32>
    %12 = arith.mulf %0, %0 : vector<2x1024xf32>
    %cst_5 = arith.constant -2.500000e-01 : f32
    %13 = vector.broadcast %cst_5 : f32 to vector<2x1024xf32>
    %14 = arith.mulf %13, %12 : vector<2x1024xf32>
    %cst_6 = arith.constant 1.000000e+00 : f32
    %15 = vector.broadcast %cst_6 : f32 to vector<2x1024xf32>
    %16 = arith.subf %15, %1 : vector<2x1024xf32>
    %17 = arith.mulf %14, %16 : vector<2x1024xf32>
    %cst_7 = arith.constant 1.000000e-07 : f32
    %18 = vector.broadcast %cst_7 : f32 to vector<2x1024xf32>
    %19 = arith.addf %3, %18 : vector<2x1024xf32>
    %20 = math.log %19 : vector<2x1024xf32>
    %21 = arith.mulf %17, %20 : vector<2x1024xf32>
    %22 = arith.addf %11, %21 : vector<2x1024xf32>
    %cst_8 = arith.constant dense<0.000000e+00> : vector<1024xf32>
    %23 = vector.multi_reduction <add>, %22, %cst_8 [0] : vector<2x1024xf32> to vector<1024xf32>
    %24 = vector.shape_cast %23 : vector<1024xf32> to vector<1x1024xf32>
    %25 = vector.shape_cast %24 : vector<1x1024xf32> to vector<1x1x1024xf32>
    %c0_9 = arith.constant 0 : index
    %c0_10 = arith.constant 0 : index
    %c0_11 = arith.constant 0 : index
    %26 = vector.load %arg3[%c0_9, %c0_10, %c0_11] : memref<1x1x1024xf32, #tpu.memory_space<vmem>>, vector<1x1x1024xf32>
    tpu.vector_store %arg3[%c0_9, %c0_10, %c0_11], %25 {strides = array<i32>} : memref<1x1x1024xf32, #tpu.memory_space<vmem>>, vector<1x1x1024xf32>,
    return
  }
  func.func @transform_0(%arg0: i32) -> (i32, i32) {
    %c0_i32 = arith.constant 0 : i32
    %c0_i32_0 = arith.constant 0 : i32
    return %arg0, %c0_i32 : i32, i32
  }
  func.func @transform_1(%arg0: i32) -> (i32, i32) {
    %c0_i32 = arith.constant 0 : i32
    %c0_i32_0 = arith.constant 0 : i32
    return %arg0, %c0_i32 : i32, i32
  }
  func.func @transform_2(%arg0: i32) -> (i32, i32, i32) {
    %c0_i32 = arith.constant 0 : i32
    %c0_i32_0 = arith.constant 0 : i32
    %c0_i32_1 = arith.constant 0 : i32
    return %arg0, %c0_i32, %c0_i32_0 : i32, i32, i32
  }
}

</mosaic_0001>

<llo_original>
// kernel: focal_loss.1
$region0: #{focal_loss.1}
  #allocation0 [shape = 'u32[]', space=smem, size = 0x4, offset = 0x4, fixed_abs, tag = 'smem constant byte address 0x4 - core index']
  #allocation1 [shape = 'u32[144,128]{1,0:T(1,128)}', space=vmem, size = 0x12000, scoped, tag = 'internal scratch']
  %s0 = inlined_call_operand.vmem [shape: f32[2,1024], index: 0, kind: input, shape index: {}]
  %s1 = inlined_call_operand.vmem [shape: f32[2,1024], index: 1, kind: input, shape index: {}]
  %s2 = inlined_call_operand.vmem [shape: f32[1,1,1024], index: 2, kind: output, shape index: {}]
  %s3 = sld [smem:[#allocation0]]
  $region18: #{focal_loss.1} parent=0
    _
  %s5 = ssub.s32 1, %s3
  %s6 = scalar_select 0, %s5, %s3
  // Predicated region
  $region2: #{focal_loss.1} parent=0 // pred_check
    _
  $region3: #{focal_loss.1} parent=0 // pred_check_branch
    %8 = sbr.rel (0) target = $region5
  $region4: #{focal_loss.1} parent=0 // pred_region
    _
  $region5: #{focal_loss.1} parent=0 // pred_fallthru
    _
  // Predicated region
  $region6: #{focal_loss.1} parent=0 // pred_check
    _
  $region7: #{focal_loss.1} parent=0 // pred_check_branch
    %10 = sbr.rel (0) target = $region9
  $region8: #{focal_loss.1} parent=0 // pred_region
    _
  $region9: #{focal_loss.1} parent=0 // pred_fallthru
    _
  %v11 = vld [vmem:[%s0] sm:$0xff]
  %v12 = vld [vmem:[%s0 + $0x8] sm:$0xff]
  %v13 = vld [vmem:[%s1] sm:$0xff]
  %v14 = vld [vmem:[%s1 + $0x8] sm:$0xff]
  %v15 = vsub.f32 1.0, %v11
  %v16 = vsub.f32 1.0, %v12
  %v17 = vmul.f32 %v15, %v15
  %v18 = vmul.f32 %v16, %v16
  %v19 = vmul.f32 %v17, -0.75
  %v20 = vmul.f32 %v18, -0.75
  %v21 = vmul.f32 %v19, %v13
  %v22 = vmul.f32 %v20, %v14
  %v23 = vadd.f32 %v11, 1e-07
  %v24 = vadd.f32 %v12, 1e-07
  %v25 = vlog2.pop %v23
  %v26 = vmul.f32 %v25, 0.6931472
  %v27 = vlog2.pop %v24
  %v28 = vmul.f32 %v27, 0.6931472
  %v29 = vmul.f32 %v21, %v26
  %v30 = vmul.f32 %v22, %v28
  %v31 = vmul.f32 %v11, %v11
  %v32 = vmul.f32 %v12, %v12
  %v33 = vmul.f32 %v31, -0.25
  %v34 = vmul.f32 %v32, -0.25
  %v35 = vsub.f32 1.0, %v13
  %v36 = vsub.f32 1.0, %v14
  %v37 = vmul.f32 %v33, %v35
  %v38 = vmul.f32 %v34, %v36
  %v39 = vadd.f32 %v15, 1e-07
  %v40 = vadd.f32 %v16, 1e-07
  %v41 = vlog2.pop %v39
  %v42 = vmul.f32 %v41, 0.6931472
  %v43 = vlog2.pop %v40
  %v44 = vmul.f32 %v43, 0.6931472
  %v45 = vmul.f32 %v37, %v42
  %v46 = vmul.f32 %v38, %v44
  %v47 = vadd.f32 %v29, %v45
  %v48 = vadd.f32 %v30, %v46
  %v51 = vcombine.high %v47, %v47
  %v53 = vunpack.c.l.s4 1983009808
  %v54 = vunpack.c.0.s8 %v53
  %v55 = vlaneseq
  %v56 = vshrl.u32 %v55, 7
  %v57 = vsub.s32 %v54, %v56
  %v58 = vrot.slane %v47, %v57
  %v60 = vunpack.c.l.s4 1983009808
  %v61 = vunpack.c.0.s8 %v60
  %v62 = vlaneseq
  %v63 = vshrl.u32 %v62, 7
  %v64 = vsub.s32 %v61, %v63
  %v65 = vrot.slane %v51, %v64
  %v66 = vcombine.high %v58, %v58
  %v67 = vcombine.high %v65, %v65
  %v68 = vcombine.high %v48, %v48
  %v70 = vunpack.c.l.s4 1983009808
  %v71 = vunpack.c.0.s8 %v70
  %v72 = vlaneseq
  %v73 = vshrl.u32 %v72, 7
  %v74 = vsub.s32 %v71, %v73
  %v75 = vrot.slane %v48, %v74
  %v77 = vunpack.c.l.s4 1983009808
  %v78 = vunpack.c.0.s8 %v77
  %v79 = vlaneseq
  %v80 = vshrl.u32 %v79, 7
  %v81 = vsub.s32 %v78, %v80
  %v82 = vrot.slane %v68, %v81
  %v83 = vcombine.high %v75, %v75
  %v84 = vcombine.high %v82, %v82
  %vm93 = vcmask 1041408
  %v94 = vsel %vm93, %v58, 0.0
  %v95 = vrot.slane %v94, 4
  %v96 = vadd.f32 %v94, %v95
  %v97 = vrot.slane %v96, 2
  %v98 = vadd.f32 %v96, %v97
  %v99 = vrot.slane %v98, 1
  %v100 = vadd.f32 %v98, %v99
  %v101 = vsel %vm93, %v66, 0.0
  %v102 = vrot.slane %v101, 4
  %v103 = vadd.f32 %v101, %v102
  %v104 = vrot.slane %v103, 2
  %v105 = vadd.f32 %v103, %v104
  %v106 = vrot.slane %v105, 1
  %v107 = vadd.f32 %v105, %v106
  %v108 = vsel %vm93, %v65, 0.0
  %v109 = vrot.slane %v108, 4
  %v110 = vadd.f32 %v108, %v109
  %v111 = vrot.slane %v110, 2
  %v112 = vadd.f32 %v110, %v111
  %v113 = vrot.slane %v112, 1
  %v114 = vadd.f32 %v112, %v113
  %v115 = vsel %vm93, %v67, 0.0
  %v116 = vrot.slane %v115, 4
  %v117 = vadd.f32 %v115, %v116
  %v118 = vrot.slane %v117, 2
  %v119 = vadd.f32 %v117, %v118
  %v120 = vrot.slane %v119, 1
  %v121 = vadd.f32 %v119, %v120
  %v122 = vsel %vm93, %v75, 0.0
  %v123 = vrot.slane %v122, 4
  %v124 = vadd.f32 %v122, %v123
  %v125 = vrot.slane %v124, 2
  %v126 = vadd.f32 %v124, %v125
  %v127 = vrot.slane %v126, 1
  %v128 = vadd.f32 %v126, %v127
  %v129 = vsel %vm93, %v83, 0.0
  %v130 = vrot.slane %v129, 4
  %v131 = vadd.f32 %v129, %v130
  %v132 = vrot.slane %v131, 2
  %v133 = vadd.f32 %v131, %v132
  %v134 = vrot.slane %v133, 1
  %v135 = vadd.f32 %v133, %v134
  %v136 = vsel %vm93, %v82, 0.0
  %v137 = vrot.slane %v136, 4
  %v138 = vadd.f32 %v136, %v137
  %v139 = vrot.slane %v138, 2
  %v140 = vadd.f32 %v138, %v139
  %v141 = vrot.slane %v140, 1
  %v142 = vadd.f32 %v140, %v141
  %v143 = vsel %vm93, %v84, 0.0
  %v144 = vrot.slane %v143, 4
  %v145 = vadd.f32 %v143, %v144
  %v146 = vrot.slane %v145, 2
  %v147 = vadd.f32 %v145, %v146
  %v148 = vrot.slane %v147, 1
  %v149 = vadd.f32 %v147, %v148
  %v158 = vcombine.low %v100, %v107
  %v159 = vcombine.low %v114, %v121
  %v160 = vcombine.low %v128, %v135
  %v161 = vcombine.low %v142, %v149
  %v163 = vunpack.c.l.s4 1966171168
  %v164 = vunpack.c.0.s8 %v163
  %v165 = vlaneseq
  %v166 = vshrl.u32 %v165, 7
  %v167 = vsub.s32 %v164, %v166
  %v168 = vrot.slane %v158, %v167
  %v170 = vunpack.c.l.s4 1966171168
  %v171 = vunpack.c.0.s8 %v170
  %v172 = vlaneseq
  %v173 = vshrl.u32 %v172, 7
  %v174 = vsub.s32 %v171, %v173
  %v175 = vrot.slane %v159, %v174
  %v177 = vunpack.c.l.s4 1966171168
  %v178 = vunpack.c.0.s8 %v177
  %v179 = vlaneseq
  %v180 = vshrl.u32 %v179, 7
  %v181 = vsub.s32 %v178, %v180
  %v182 = vrot.slane %v160, %v181
  %v184 = vunpack.c.l.s4 1966171168
  %v185 = vunpack.c.0.s8 %v184
  %v186 = vlaneseq
  %v187 = vshrl.u32 %v186, 7
  %v188 = vsub.s32 %v185, %v187
  %v189 = vrot.slane %v161, %v188
  %v190 = vcombine.low %v168, %v175
  %v191 = vcombine.low %v182, %v189
  %v193 = vunpack.c.l.s4 1966171168
  %v194 = vunpack.c.0.s8 %v193
  %v195 = vlaneseq
  %v196 = vshrl.u32 %v195, 7
  %v197 = vsub.s32 %v194, %v196
  %v198 = vrot.slane %v190, %v197
  %v200 = vunpack.c.l.s4 1966171168
  %v201 = vunpack.c.0.s8 %v200
  %v202 = vlaneseq
  %v203 = vshrl.u32 %v202, 7
  %v204 = vsub.s32 %v201, %v203
  %v205 = vrot.slane %v191, %v204
  %v206 = vcombine.low %v198, %v205
  %208 = vst [vmem:[%s2] sm:$0xff] %v206
  // Predicated region
  $region10: #{focal_loss.1} parent=0 // pred_check
    _
  $region11: #{focal_loss.1} parent=0 // pred_check_branch
    %210 = sbr.rel (0) target = $region13
  $region12: #{focal_loss.1} parent=0 // pred_region
    _
  $region13: #{focal_loss.1} parent=0 // pred_fallthru
    _
  // Predicated region
  $region14: #{focal_loss.1} parent=0 // pred_check
    _
  $region15: #{focal_loss.1} parent=0 // pred_check_branch
    %212 = sbr.rel (0) target = $region17
  $region16: #{focal_loss.1} parent=0 // pred_region
    _
  $region17: #{focal_loss.1} parent=0 // pred_fallthru
    _

</llo_original>
